<compile_context>
chip_gen: v5e
topology: v5e:2x2
jax: 0.10.0
libtpu: 0.0.40
codegen_flags: <defaults>
</compile_context>

<pallas_src>
import jax
import jax.numpy as jnp
from jax.experimental import pallas as pl
from jax.experimental.pallas import tpu as pltpu

STATE_SPACE = 4     # CartPole-v1 observation_space.shape[0]
ACTION_SPACE = 2    # CartPole-v1 action_space.n
HIDDEN = 128


def _policy_kernel(x_ref, w1_ref, b1_ref, w2_ref, b2_ref, out_ref):
    # x_ref:  (4, TB)    float32  -- batch on the lane axis
    # w1_ref: (128, 4)   float32  -- fc1.weight (PyTorch layout)
    # b1_ref: (128, 1)   float32
    # w2_ref: (2, 128)   float32  -- fc2.weight (PyTorch layout)
    # b2_ref: (2, 1)     float32
    # out_ref:(2, TB)    float32  -- softmax probabilities, batch on the lane axis
    x = x_ref[...]            # (4, TB)
    w1 = w1_ref[...]          # (128, 4)

    # fc1 with K=4 on the VPU: four broadcast FMAs instead of a near-empty MXU pass.
    h = b1_ref[...] + w1[:, 0:1] * x[0:1, :]
    h = h + w1[:, 1:2] * x[1:2, :]
    h = h + w1[:, 2:3] * x[2:3, :]
    h = h + w1[:, 3:4] * x[3:4, :]
    h = jnp.maximum(h, 0.0)                                   # (128, TB) ReLU

    # fc2 on the MXU: full K=128, lane-dense (2, TB) result.
    logits = jnp.dot(w2_ref[...], h,
                     preferred_element_type=jnp.float32) + b2_ref[...]   # (2, TB)

    # 2-class softmax == sigmoid(logit1 - logit0): pure elementwise VPU/EUP work.
    d = logits[1:2, :] - logits[0:1, :]                       # (1, TB)
    p1 = 1.0 / (1.0 + jnp.exp(-d))
    out_ref[0:1, :] = 1.0 - p1
    out_ref[1:2, :] = p1


def policy_forward(x, w1, b1, w2, b2, *, tb=512):
    """Policy.forward: softmax(relu(x @ W1^T + b1) @ W2^T + b2, dim=1) -> (B, 2).

    Weights use the PyTorch nn.Linear layout: w1 (128,4), b1 (128,), w2 (2,128), b2 (2,).
    """
    x = jnp.asarray(x, jnp.float32).reshape(-1, STATE_SPACE)
    B = x.shape[0]

    # Batch lives on the lane axis; round it up to a lane-aligned tile.
    b_lane = ((B + 127) // 128) * 128
    TB = min(tb, b_lane)
    B_pad = ((b_lane + TB - 1) // TB) * TB
    x_t = jnp.pad(x.T, ((0, 0), (0, B_pad - B)))              # (4, B_pad)

    b1_2d = jnp.asarray(b1, jnp.float32).reshape(HIDDEN, 1)
    b2_2d = jnp.asarray(b2, jnp.float32).reshape(ACTION_SPACE, 1)

    grid = (B_pad // TB,)
    flops = B_pad * (2 * STATE_SPACE * HIDDEN + 2 * HIDDEN * ACTION_SPACE + 8)
    bytes_accessed = (B_pad * (STATE_SPACE + ACTION_SPACE) * 4
                      + (HIDDEN * STATE_SPACE + HIDDEN
                         + ACTION_SPACE * HIDDEN + ACTION_SPACE) * 4)

    out_t = pl.pallas_call(
        _policy_kernel,
        out_shape=jax.ShapeDtypeStruct((ACTION_SPACE, B_pad), jnp.float32),
        grid=grid,
        in_specs=[
            pl.BlockSpec((STATE_SPACE, TB), lambda i: (0, i)),      # x batch tile
            pl.BlockSpec((HIDDEN, STATE_SPACE), lambda i: (0, 0)),  # weights stay resident
            pl.BlockSpec((HIDDEN, 1), lambda i: (0, 0)),
            pl.BlockSpec((ACTION_SPACE, HIDDEN), lambda i: (0, 0)),
            pl.BlockSpec((ACTION_SPACE, 1), lambda i: (0, 0)),
        ],
        out_specs=pl.BlockSpec((ACTION_SPACE, TB), lambda i: (0, i)),
        compiler_params=pltpu.CompilerParams(
            dimension_semantics=("parallel",)),   # batch tiles shard across v7x's 2 TCs
        cost_estimate=pl.CostEstimate(
            flops=flops, transcendentals=B_pad, bytes_accessed=bytes_accessed),
    )(x_t, jnp.asarray(w1, jnp.float32), b1_2d, jnp.asarray(w2, jnp.float32), b2_2d)

    return out_t[:, :B].T                                      # back to (B, 2)


def _reference_forward(x, w1, b1, w2, b2):
    x = jnp.asarray(x, jnp.float32).reshape(-1, STATE_SPACE)
    h = jnp.maximum(x @ w1.T + b1, 0.0)
    logits = h @ w2.T + b2
    return jax.nn.softmax(logits, axis=1)


if __name__ == "__main__":
    key = jax.random.PRNGKey(0)
    k_w1, k_b1, k_w2, k_b2, k_x1, k_x2 = jax.random.split(key, 6)

    # Deterministic parameter init in PyTorch Linear layout.
    bound1 = 1.0 / (STATE_SPACE ** 0.5)
    bound2 = 1.0 / (HIDDEN ** 0.5)
    w1 = jax.random.uniform(k_w1, (HIDDEN, STATE_SPACE), jnp.float32, -bound1, bound1)
    b1 = jax.random.uniform(k_b1, (HIDDEN,), jnp.float32, -bound1, bound1)
    w2 = jax.random.uniform(k_w2, (ACTION_SPACE, HIDDEN), jnp.float32, -bound2, bound2)
    b2 = jax.random.uniform(k_b2, (ACTION_SPACE,), jnp.float32, -bound2, bound2)

    # Small RL-style batch (single tile).
    x_small = jax.random.normal(k_x1, (8, STATE_SPACE), dtype=jnp.float32)
    probs_small = jax.block_until_ready(policy_forward(x_small, w1, b1, w2, b2))
    ref_small = _reference_forward(x_small, w1, b1, w2, b2)
    assert probs_small.shape == (8, ACTION_SPACE)
    assert jnp.allclose(probs_small, ref_small, atol=1e-5, rtol=1e-5)
    assert jnp.allclose(jnp.sum(probs_small, axis=1), 1.0, atol=1e-5)

    # Larger batch exercising the multi-tile grid + padding path.
    x_big = jax.random.normal(k_x2, (700, STATE_SPACE), dtype=jnp.float32)
    probs_big = jax.block_until_ready(policy_forward(x_big, w1, b1, w2, b2))
    ref_big = _reference_forward(x_big, w1, b1, w2, b2)
    assert probs_big.shape == (700, ACTION_SPACE)
    assert jnp.allclose(probs_big, ref_big, atol=1e-5, rtol=1e-5)
    assert jnp.allclose(jnp.sum(probs_big, axis=1), 1.0, atol=1e-5)

    print("KERNEL_OK")
</pallas_src>

<mosaic_0001>
module attributes {stable_mosaic.version = 11 : i64} {
  func.func @_policy_kernel(%arg0: i32, %arg1: memref<4x128xf32, #tpu.memory_space<vmem>>, %arg2: memref<128x4xf32, #tpu.memory_space<vmem>>, %arg3: memref<128x1xf32, #tpu.memory_space<vmem>>, %arg4: memref<2x128xf32, #tpu.memory_space<vmem>>, %arg5: memref<2x1xf32, #tpu.memory_space<vmem>>, %arg6: memref<2x128xf32, #tpu.memory_space<vmem>>) attributes {dimension_semantics = [#tpu.dimension_semantics<parallel>], iteration_bounds = array<i64: 1>, scalar_prefetch = 0 : i64, scratch_operands = 0 : i64, tpu.core_type = #tpu.core_type<tc>, window_params = [{transform_indices = @transform_0, window_bounds = array<i64: 4, 128>}, {pipeline_mode = #tpu.pipeline_mode<synchronous>, transform_indices = @transform_1, window_bounds = array<i64: 128, 4>}, {pipeline_mode = #tpu.pipeline_mode<synchronous>, transform_indices = @transform_2, window_bounds = array<i64: 128, 1>}, {pipeline_mode = #tpu.pipeline_mode<synchronous>, transform_indices = @transform_3, window_bounds = array<i64: 2, 128>}, {pipeline_mode = #tpu.pipeline_mode<synchronous>, transform_indices = @transform_4, window_bounds = array<i64: 2, 1>}, {transform_indices = @transform_5, window_bounds = array<i64: 2, 128>}]} {
    %c0 = arith.constant 0 : index
    %c0_0 = arith.constant 0 : index
    %0 = vector.load %arg1[%c0, %c0_0] : memref<4x128xf32, #tpu.memory_space<vmem>>, vector<4x128xf32>
    %c0_1 = arith.constant 0 : index
    %c0_2 = arith.constant 0 : index
    %1 = vector.load %arg2[%c0_1, %c0_2] : memref<128x4xf32, #tpu.memory_space<vmem>>, vector<128x4xf32>
    %c0_3 = arith.constant 0 : index
    %c0_4 = arith.constant 0 : index
    %2 = vector.load %arg3[%c0_3, %c0_4] : memref<128x1xf32, #tpu.memory_space<vmem>>, vector<128x1xf32>
    %3 = vector.extract_strided_slice %1 {offsets = [0, 0], sizes = [128, 1], strides = [1, 1]} : vector<128x4xf32> to vector<128x1xf32>
    %4 = vector.extract_strided_slice %0 {offsets = [0, 0], sizes = [1, 128], strides = [1, 1]} : vector<4x128xf32> to vector<1x128xf32>
    %5 = vector.broadcast %3 : vector<128x1xf32> to vector<128x128xf32>
    %6 = vector.broadcast %4 : vector<1x128xf32> to vector<128x128xf32>
    %7 = arith.mulf %5, %6 : vector<128x128xf32>
    %8 = vector.broadcast %2 : vector<128x1xf32> to vector<128x128xf32>
    %9 = arith.addf %8, %7 : vector<128x128xf32>
    %10 = vector.extract_strided_slice %1 {offsets = [0, 1], sizes = [128, 1], strides = [1, 1]} : vector<128x4xf32> to vector<128x1xf32>
    %11 = vector.extract_strided_slice %0 {offsets = [1, 0], sizes = [1, 128], strides = [1, 1]} : vector<4x128xf32> to vector<1x128xf32>
    %12 = vector.broadcast %10 : vector<128x1xf32> to vector<128x128xf32>
    %13 = vector.broadcast %11 : vector<1x128xf32> to vector<128x128xf32>
    %14 = arith.mulf %12, %13 : vector<128x128xf32>
    %15 = arith.addf %9, %14 : vector<128x128xf32>
    %16 = vector.extract_strided_slice %1 {offsets = [0, 2], sizes = [128, 1], strides = [1, 1]} : vector<128x4xf32> to vector<128x1xf32>
    %17 = vector.extract_strided_slice %0 {offsets = [2, 0], sizes = [1, 128], strides = [1, 1]} : vector<4x128xf32> to vector<1x128xf32>
    %18 = vector.broadcast %16 : vector<128x1xf32> to vector<128x128xf32>
    %19 = vector.broadcast %17 : vector<1x128xf32> to vector<128x128xf32>
    %20 = arith.mulf %18, %19 : vector<128x128xf32>
    %21 = arith.addf %15, %20 : vector<128x128xf32>
    %22 = vector.extract_strided_slice %1 {offsets = [0, 3], sizes = [128, 1], strides = [1, 1]} : vector<128x4xf32> to vector<128x1xf32>
    %23 = vector.extract_strided_slice %0 {offsets = [3, 0], sizes = [1, 128], strides = [1, 1]} : vector<4x128xf32> to vector<1x128xf32>
    %24 = vector.broadcast %22 : vector<128x1xf32> to vector<128x128xf32>
    %25 = vector.broadcast %23 : vector<1x128xf32> to vector<128x128xf32>
    %26 = arith.mulf %24, %25 : vector<128x128xf32>
    %27 = arith.addf %21, %26 : vector<128x128xf32>
    %cst = arith.constant 0.000000e+00 : f32
    %28 = vector.broadcast %cst : f32 to vector<128x128xf32>
    %29 = arith.maximumf %27, %28 : vector<128x128xf32>
    %c0_5 = arith.constant 0 : index
    %c0_6 = arith.constant 0 : index
    %30 = vector.load %arg4[%c0_5, %c0_6] : memref<2x128xf32, #tpu.memory_space<vmem>>, vector<2x128xf32>
    %cst_7 = arith.constant dense<0.000000e+00> : vector<2x128xf32>
    %31 = tpu.matmul %30, %29, %cst_7 {dimension_numbers = #tpu.dot_dimension_numbers<[1], [0], [0], [1], [0, 0, 1, 1], [], []>} : vector<2x128xf32>, vector<128x128xf32>, vector<2x128xf32> -> vector<2x128xf32>
    %c0_8 = arith.constant 0 : index
    %c0_9 = arith.constant 0 : index
    %32 = vector.load %arg5[%c0_8, %c0_9] : memref<2x1xf32, #tpu.memory_space<vmem>>, vector<2x1xf32>
    %33 = vector.broadcast %32 : vector<2x1xf32> to vector<2x128xf32>
    %34 = arith.addf %31, %33 : vector<2x128xf32>
    %35 = vector.extract_strided_slice %34 {offsets = [1, 0], sizes = [1, 128], strides = [1, 1]} : vector<2x128xf32> to vector<1x128xf32>
    %36 = vector.extract_strided_slice %34 {offsets = [0, 0], sizes = [1, 128], strides = [1, 1]} : vector<2x128xf32> to vector<1x128xf32>
    %37 = arith.subf %35, %36 : vector<1x128xf32>
    %cst_10 = arith.constant 0.000000e+00 : f32
    %38 = vector.broadcast %cst_10 : f32 to vector<1x128xf32>
    %39 = arith.subf %38, %37 : vector<1x128xf32>
    %40 = math.exp %39 : vector<1x128xf32>
    %cst_11 = arith.constant 1.000000e+00 : f32
    %41 = vector.broadcast %cst_11 : f32 to vector<1x128xf32>
    %42 = arith.addf %41, %40 : vector<1x128xf32>
    %cst_12 = arith.constant 1.000000e+00 : f32
    %43 = vector.broadcast %cst_12 : f32 to vector<1x128xf32>
    %44 = arith.divf %43, %42 : vector<1x128xf32>
    %cst_13 = arith.constant 1.000000e+00 : f32
    %45 = vector.broadcast %cst_13 : f32 to vector<1x128xf32>
    %46 = arith.subf %45, %44 : vector<1x128xf32>
    %c0_14 = arith.constant 0 : index
    %c0_15 = arith.constant 0 : index
    %47 = vector.load %arg6[%c0_14, %c0_15] : memref<2x128xf32, #tpu.memory_space<vmem>>, vector<1x128xf32>
    tpu.vector_store %arg6[%c0_14, %c0_15], %46 {strides = array<i32>} : memref<2x128xf32, #tpu.memory_space<vmem>>, vector<1x128xf32>,
    %c1 = arith.constant 1 : index
    %c0_16 = arith.constant 0 : index
    %48 = vector.load %arg6[%c1, %c0_16] : memref<2x128xf32, #tpu.memory_space<vmem>>, vector<1x128xf32>
    tpu.vector_store %arg6[%c1, %c0_16], %44 {strides = array<i32>} : memref<2x128xf32, #tpu.memory_space<vmem>>, vector<1x128xf32>,
    return
  }
  func.func @transform_0(%arg0: i32) -> (i32, i32) {
    %c0_i32 = arith.constant 0 : i32
    %c0_i32_0 = arith.constant 0 : i32
    return %c0_i32, %arg0 : i32, i32
  }
  func.func @transform_1(%arg0: i32) -> (i32, i32) {
    %c0_i32 = arith.constant 0 : i32
    %c0_i32_0 = arith.constant 0 : i32
    %c0_i32_1 = arith.constant 0 : i32
    return %c0_i32, %c0_i32_0 : i32, i32
  }
  func.func @transform_2(%arg0: i32) -> (i32, i32) {
    %c0_i32 = arith.constant 0 : i32
    %c0_i32_0 = arith.constant 0 : i32
    %c0_i32_1 = arith.constant 0 : i32
    return %c0_i32, %c0_i32_0 : i32, i32
  }
  func.func @transform_3(%arg0: i32) -> (i32, i32) {
    %c0_i32 = arith.constant 0 : i32
    %c0_i32_0 = arith.constant 0 : i32
    %c0_i32_1 = arith.constant 0 : i32
    return %c0_i32, %c0_i32_0 : i32, i32
  }
  func.func @transform_4(%arg0: i32) -> (i32, i32) {
    %c0_i32 = arith.constant 0 : i32
    %c0_i32_0 = arith.constant 0 : i32
    %c0_i32_1 = arith.constant 0 : i32
    return %c0_i32, %c0_i32_0 : i32, i32
  }
  func.func @transform_5(%arg0: i32) -> (i32, i32) {
    %c0_i32 = arith.constant 0 : i32
    %c0_i32_0 = arith.constant 0 : i32
    return %c0_i32, %arg0 : i32, i32
  }
}

</mosaic_0001>

<llo_original>
// kernel: tpu_custom_call.1
$region0: #{tpu_custom_call.1}
  #allocation0 [shape = 'u32[]', space=smem, size = 0x4, offset = 0x4, fixed_abs, tag = 'smem constant byte address 0x4 - core index']
  #allocation1 [shape = 'u32[72,128]{1,0:T(1,128)}', space=vmem, size = 0x9000, scoped, tag = 'internal scratch']
  %s0 = inlined_call_operand.vmem [shape: f32[4,128], index: 0, kind: input, shape index: {}]
  %s1 = inlined_call_operand.vmem [shape: f32[128,4], index: 1, kind: input, shape index: {}]
  %s2 = inlined_call_operand.vmem [shape: f32[128,1], index: 2, kind: input, shape index: {}]
  %s3 = inlined_call_operand.vmem [shape: f32[2,128], index: 3, kind: input, shape index: {}]
  %s4 = inlined_call_operand.vmem [shape: f32[2,1], index: 4, kind: input, shape index: {}]
  %s5 = inlined_call_operand.hbm [shape: f32[2,128], index: 5, kind: output, shape index: {}]
  %s6 = sld [smem:[#allocation0]]
  $region30: #{tpu_custom_call.1} parent=0
    _
  %s8 = ssub.s32 1, %s6
  %s9 = scalar_select 0, %s8, %s6
  $region1: #{tpu_custom_call.1} parent=0
    #allocation2 [shape = 'u8[1024]{0}', space=vmem, size = 0x400, scoped, tag = 'output window, operand 0, single buffered']
    #allocation3 [shape = 's32[1]{0}', space=sflag, size = 0x4, scoped, tag = 'scoped memory for tpu_custom_call.1']
    %10 = vsyncpa [#allocation3], 0
    // Predicated region
    $region2: #{tpu_custom_call.1} parent=1 // pred_check
      _
    $region3: #{tpu_custom_call.1} parent=1 // pred_check_branch
      %12 = sbr.rel (0) target = $region5
    $region4: #{tpu_custom_call.1} parent=1 // pred_region
      _
    $region5: #{tpu_custom_call.1} parent=1 // pred_fallthru
      _
    // Predicated region
    $region6: #{tpu_custom_call.1} parent=1 // pred_check
      _
    $region7: #{tpu_custom_call.1} parent=1 // pred_check_branch
      %14 = sbr.rel (0) target = $region9
    $region8: #{tpu_custom_call.1} parent=1 // pred_region
      _
    $region9: #{tpu_custom_call.1} parent=1 // pred_fallthru
      _
    // Predicated region
    $region10: #{tpu_custom_call.1} parent=1 // pred_check
      _
    $region11: #{tpu_custom_call.1} parent=1 // pred_check_branch
      %16 = sbr.rel (0) target = $region13
    $region12: #{tpu_custom_call.1} parent=1 // pred_region
      _
    $region13: #{tpu_custom_call.1} parent=1 // pred_fallthru
      _
    // Predicated region
    $region14: #{tpu_custom_call.1} parent=1 // pred_check
      _
    $region15: #{tpu_custom_call.1} parent=1 // pred_check_branch
      %18 = sbr.rel (0) target = $region17
    $region16: #{tpu_custom_call.1} parent=1 // pred_region
      _
    $region17: #{tpu_custom_call.1} parent=1 // pred_fallthru
      _
    // Predicated region
    $region18: #{tpu_custom_call.1} parent=1 // pred_check
      _
    $region19: #{tpu_custom_call.1} parent=1 // pred_check_branch
      %20 = sbr.rel (0) target = $region21
    $region20: #{tpu_custom_call.1} parent=1 // pred_region
      _
    $region21: #{tpu_custom_call.1} parent=1 // pred_fallthru
      _
    %v21 = vld [vmem:[%s0] sm:$0xf]
    %v22 = vld [vmem:[%s1] sm:$0xff]
    %v23 = vld [vmem:[%s1 + $0x8] sm:$0xff]
    %v24 = vld [vmem:[%s1 + $0x10] sm:$0xff]
    %v25 = vld [vmem:[%s1 + $0x18] sm:$0xff]
    %v26 = vld [vmem:[%s1 + $0x20] sm:$0xff]
    %v27 = vld [vmem:[%s1 + $0x28] sm:$0xff]
    %v28 = vld [vmem:[%s1 + $0x30] sm:$0xff]
    %v29 = vld [vmem:[%s1 + $0x38] sm:$0xff]
    %v30 = vld [vmem:[%s1 + $0x40] sm:$0xff]
    %v31 = vld [vmem:[%s1 + $0x48] sm:$0xff]
    %v32 = vld [vmem:[%s1 + $0x50] sm:$0xff]
    %v33 = vld [vmem:[%s1 + $0x58] sm:$0xff]
    %v34 = vld [vmem:[%s1 + $0x60] sm:$0xff]
    %v35 = vld [vmem:[%s1 + $0x68] sm:$0xff]
    %v36 = vld [vmem:[%s1 + $0x70] sm:$0xff]
    %v37 = vld [vmem:[%s1 + $0x78] sm:$0xff]
    %v38 = vld [vmem:[%s2] sm:$0xff]
    %v39 = vld [vmem:[%s2 + $0x8] sm:$0xff]
    %v40 = vld [vmem:[%s2 + $0x10] sm:$0xff]
    %v41 = vld [vmem:[%s2 + $0x18] sm:$0xff]
    %v42 = vld [vmem:[%s2 + $0x20] sm:$0xff]
    %v43 = vld [vmem:[%s2 + $0x28] sm:$0xff]
    %v44 = vld [vmem:[%s2 + $0x30] sm:$0xff]
    %v45 = vld [vmem:[%s2 + $0x38] sm:$0xff]
    %v46 = vld [vmem:[%s2 + $0x40] sm:$0xff]
    %v47 = vld [vmem:[%s2 + $0x48] sm:$0xff]
    %v48 = vld [vmem:[%s2 + $0x50] sm:$0xff]
    %v49 = vld [vmem:[%s2 + $0x58] sm:$0xff]
    %v50 = vld [vmem:[%s2 + $0x60] sm:$0xff]
    %v51 = vld [vmem:[%s2 + $0x68] sm:$0xff]
    %v52 = vld [vmem:[%s2 + $0x70] sm:$0xff]
    %v53 = vld [vmem:[%s2 + $0x78] sm:$0xff]
    %55 = vset.pattern.permute.xlu0 0
    %56 = vperm.xlu0 %55, %v22
    %v57 = vpop.permute.xlu0 %56
    %60 = vset.pattern.permute.xlu0 0
    %61 = vperm.xlu0 %60, %v23
    %v62 = vpop.permute.xlu0 %61
    %65 = vset.pattern.permute.xlu0 0
    %66 = vperm.xlu0 %65, %v24
    %v67 = vpop.permute.xlu0 %66
    %70 = vset.pattern.permute.xlu0 0
    %71 = vperm.xlu0 %70, %v25
    %v72 = vpop.permute.xlu0 %71
    %75 = vset.pattern.permute.xlu0 0
    %76 = vperm.xlu0 %75, %v26
    %v77 = vpop.permute.xlu0 %76
    %80 = vset.pattern.permute.xlu0 0
    %81 = vperm.xlu0 %80, %v27
    %v82 = vpop.permute.xlu0 %81
    %85 = vset.pattern.permute.xlu0 0
    %86 = vperm.xlu0 %85, %v28
    %v87 = vpop.permute.xlu0 %86
    %90 = vset.pattern.permute.xlu0 0
    %91 = vperm.xlu0 %90, %v29
    %v92 = vpop.permute.xlu0 %91
    %95 = vset.pattern.permute.xlu0 0
    %96 = vperm.xlu0 %95, %v30
    %v97 = vpop.permute.xlu0 %96
    %100 = vset.pattern.permute.xlu0 0
    %101 = vperm.xlu0 %100, %v31
    %v102 = vpop.permute.xlu0 %101
    %105 = vset.pattern.permute.xlu0 0
    %106 = vperm.xlu0 %105, %v32
    %v107 = vpop.permute.xlu0 %106
    %110 = vset.pattern.permute.xlu0 0
    %111 = vperm.xlu0 %110, %v33
    %v112 = vpop.permute.xlu0 %111
    %115 = vset.pattern.permute.xlu0 0
    %116 = vperm.xlu0 %115, %v34
    %v117 = vpop.permute.xlu0 %116
    %120 = vset.pattern.permute.xlu0 0
    %121 = vperm.xlu0 %120, %v35
    %v122 = vpop.permute.xlu0 %121
    %125 = vset.pattern.permute.xlu0 0
    %126 = vperm.xlu0 %125, %v36
    %v127 = vpop.permute.xlu0 %126
    %130 = vset.pattern.permute.xlu0 0
    %131 = vperm.xlu0 %130, %v37
    %v132 = vpop.permute.xlu0 %131
    %v134 = vperm.slane %v21, 0
    %v135 = vmul.f32 %v57, %v134
    %v136 = vmul.f32 %v62, %v134
    %v137 = vmul.f32 %v67, %v134
    %v138 = vmul.f32 %v72, %v134
    %v139 = vmul.f32 %v77, %v134
    %v140 = vmul.f32 %v82, %v134
    %v141 = vmul.f32 %v87, %v134
    %v142 = vmul.f32 %v92, %v134
    %v143 = vmul.f32 %v97, %v134
    %v144 = vmul.f32 %v102, %v134
    %v145 = vmul.f32 %v107, %v134
    %v146 = vmul.f32 %v112, %v134
    %v147 = vmul.f32 %v117, %v134
    %v148 = vmul.f32 %v122, %v134
    %v149 = vmul.f32 %v127, %v134
    %v150 = vmul.f32 %v132, %v134
    %152 = vset.pattern.permute.xlu0 0
    %153 = vperm.xlu0 %152, %v38
    %v154 = vpop.permute.xlu0 %153
    %157 = vset.pattern.permute.xlu0 0
    %158 = vperm.xlu0 %157, %v39
    %v159 = vpop.permute.xlu0 %158
    %162 = vset.pattern.permute.xlu0 0
    %163 = vperm.xlu0 %162, %v40
    %v164 = vpop.permute.xlu0 %163
    %167 = vset.pattern.permute.xlu0 0
    %168 = vperm.xlu0 %167, %v41
    %v169 = vpop.permute.xlu0 %168
    %172 = vset.pattern.permute.xlu0 0
    %173 = vperm.xlu0 %172, %v42
    %v174 = vpop.permute.xlu0 %173
    %177 = vset.pattern.permute.xlu0 0
    %178 = vperm.xlu0 %177, %v43
    %v179 = vpop.permute.xlu0 %178
    %182 = vset.pattern.permute.xlu0 0
    %183 = vperm.xlu0 %182, %v44
    %v184 = vpop.permute.xlu0 %183
    %187 = vset.pattern.permute.xlu0 0
    %188 = vperm.xlu0 %187, %v45
    %v189 = vpop.permute.xlu0 %188
    %192 = vset.pattern.permute.xlu0 0
    %193 = vperm.xlu0 %192, %v46
    %v194 = vpop.permute.xlu0 %193
    %197 = vset.pattern.permute.xlu0 0
    %198 = vperm.xlu0 %197, %v47
    %v199 = vpop.permute.xlu0 %198
    %202 = vset.pattern.permute.xlu0 0
    %203 = vperm.xlu0 %202, %v48
    %v204 = vpop.permute.xlu0 %203
    %207 = vset.pattern.permute.xlu0 0
    %208 = vperm.xlu0 %207, %v49
    %v209 = vpop.permute.xlu0 %208
    %212 = vset.pattern.permute.xlu0 0
    %213 = vperm.xlu0 %212, %v50
    %v214 = vpop.permute.xlu0 %213
    %217 = vset.pattern.permute.xlu0 0
    %218 = vperm.xlu0 %217, %v51
    %v219 = vpop.permute.xlu0 %218
    %222 = vset.pattern.permute.xlu0 0
    %223 = vperm.xlu0 %222, %v52
    %v224 = vpop.permute.xlu0 %223
    %227 = vset.pattern.permute.xlu0 0
    %228 = vperm.xlu0 %227, %v53
    %v229 = vpop.permute.xlu0 %228
    %v231 = vadd.f32 %v154, %v135
    %v232 = vadd.f32 %v159, %v136
    %v233 = vadd.f32 %v164, %v137
    %v234 = vadd.f32 %v169, %v138
    %v235 = vadd.f32 %v174, %v139
    %v236 = vadd.f32 %v179, %v140
    %v237 = vadd.f32 %v184, %v141
    %v238 = vadd.f32 %v189, %v142
    %v239 = vadd.f32 %v194, %v143
    %v240 = vadd.f32 %v199, %v144
    %v241 = vadd.f32 %v204, %v145
    %v242 = vadd.f32 %v209, %v146
    %v243 = vadd.f32 %v214, %v147
    %v244 = vadd.f32 %v219, %v148
    %v245 = vadd.f32 %v224, %v149
    %v246 = vadd.f32 %v229, %v150
    %247 = vset.pattern.permute.xlu0 1
    %248 = vperm.xlu0 %247, %v22
    %v249 = vpop.permute.xlu0 %248
    %251 = vset.pattern.permute.xlu0 1
    %252 = vperm.xlu0 %251, %v23
    %v253 = vpop.permute.xlu0 %252
    %255 = vset.pattern.permute.xlu0 1
    %256 = vperm.xlu0 %255, %v24
    %v257 = vpop.permute.xlu0 %256
    %259 = vset.pattern.permute.xlu0 1
    %260 = vperm.xlu0 %259, %v25
    %v261 = vpop.permute.xlu0 %260
    %263 = vset.pattern.permute.xlu0 1
    %264 = vperm.xlu0 %263, %v26
    %v265 = vpop.permute.xlu0 %264
    %267 = vset.pattern.permute.xlu0 1
    %268 = vperm.xlu0 %267, %v27
    %v269 = vpop.permute.xlu0 %268
    %271 = vset.pattern.permute.xlu0 1
    %272 = vperm.xlu0 %271, %v28
    %v273 = vpop.permute.xlu0 %272
    %275 = vset.pattern.permute.xlu0 1
    %276 = vperm.xlu0 %275, %v29
    %v277 = vpop.permute.xlu0 %276
    %279 = vset.pattern.permute.xlu0 1
    %280 = vperm.xlu0 %279, %v30
    %v281 = vpop.permute.xlu0 %280
    %283 = vset.pattern.permute.xlu0 1
    %284 = vperm.xlu0 %283, %v31
    %v285 = vpop.permute.xlu0 %284
    %287 = vset.pattern.permute.xlu0 1
    %288 = vperm.xlu0 %287, %v32
    %v289 = vpop.permute.xlu0 %288
    %291 = vset.pattern.permute.xlu0 1
    %292 = vperm.xlu0 %291, %v33
    %v293 = vpop.permute.xlu0 %292
    %295 = vset.pattern.permute.xlu0 1
    %296 = vperm.xlu0 %295, %v34
    %v297 = vpop.permute.xlu0 %296
    %299 = vset.pattern.permute.xlu0 1
    %300 = vperm.xlu0 %299, %v35
    %v301 = vpop.permute.xlu0 %300
    %303 = vset.pattern.permute.xlu0 1
    %304 = vperm.xlu0 %303, %v36
    %v305 = vpop.permute.xlu0 %304
    %307 = vset.pattern.permute.xlu0 1
    %308 = vperm.xlu0 %307, %v37
    %v309 = vpop.permute.xlu0 %308
    %v311 = vperm.slane %v21, 1
    %v312 = vmul.f32 %v249, %v311
    %v313 = vmul.f32 %v253, %v311
    %v314 = vmul.f32 %v257, %v311
    %v315 = vmul.f32 %v261, %v311
    %v316 = vmul.f32 %v265, %v311
    %v317 = vmul.f32 %v269, %v311
    %v318 = vmul.f32 %v273, %v311
    %v319 = vmul.f32 %v277, %v311
    %v320 = vmul.f32 %v281, %v311
    %v321 = vmul.f32 %v285, %v311
    %v322 = vmul.f32 %v289, %v311
    %v323 = vmul.f32 %v293, %v311
    %v324 = vmul.f32 %v297, %v311
    %v325 = vmul.f32 %v301, %v311
    %v326 = vmul.f32 %v305, %v311
    %v327 = vmul.f32 %v309, %v311
    %v328 = vadd.f32 %v231, %v312
    %v329 = vadd.f32 %v232, %v313
    %v330 = vadd.f32 %v233, %v314
    %v331 = vadd.f32 %v234, %v315
    %v332 = vadd.f32 %v235, %v316
    %v333 = vadd.f32 %v236, %v317
    %v334 = vadd.f32 %v237, %v318
    %v335 = vadd.f32 %v238, %v319
    %v336 = vadd.f32 %v239, %v320
    %v337 = vadd.f32 %v240, %v321
    %v338 = vadd.f32 %v241, %v322
    %v339 = vadd.f32 %v242, %v323
    %v340 = vadd.f32 %v243, %v324
    %v341 = vadd.f32 %v244, %v325
    %v342 = vadd.f32 %v245, %v326
    %v343 = vadd.f32 %v246, %v327
    %344 = vset.pattern.permute.xlu0 2
    %345 = vperm.xlu0 %344, %v22
    %v346 = vpop.permute.xlu0 %345
    %348 = vset.pattern.permute.xlu0 2
    %349 = vperm.xlu0 %348, %v23
    %v350 = vpop.permute.xlu0 %349
    %352 = vset.pattern.permute.xlu0 2
    %353 = vperm.xlu0 %352, %v24
    %v354 = vpop.permute.xlu0 %353
    %356 = vset.pattern.permute.xlu0 2
    %357 = vperm.xlu0 %356, %v25
    %v358 = vpop.permute.xlu0 %357
    %360 = vset.pattern.permute.xlu0 2
    %361 = vperm.xlu0 %360, %v26
    %v362 = vpop.permute.xlu0 %361
    %364 = vset.pattern.permute.xlu0 2
    %365 = vperm.xlu0 %364, %v27
    %v366 = vpop.permute.xlu0 %365
    %368 = vset.pattern.permute.xlu0 2
    %369 = vperm.xlu0 %368, %v28
    %v370 = vpop.permute.xlu0 %369
    %372 = vset.pattern.permute.xlu0 2
    %373 = vperm.xlu0 %372, %v29
    %v374 = vpop.permute.xlu0 %373
    %376 = vset.pattern.permute.xlu0 2
    %377 = vperm.xlu0 %376, %v30
    %v378 = vpop.permute.xlu0 %377
    %380 = vset.pattern.permute.xlu0 2
    %381 = vperm.xlu0 %380, %v31
    %v382 = vpop.permute.xlu0 %381
    %384 = vset.pattern.permute.xlu0 2
    %385 = vperm.xlu0 %384, %v32
    %v386 = vpop.permute.xlu0 %385
    %388 = vset.pattern.permute.xlu0 2
    %389 = vperm.xlu0 %388, %v33
    %v390 = vpop.permute.xlu0 %389
    %392 = vset.pattern.permute.xlu0 2
    %393 = vperm.xlu0 %392, %v34
    %v394 = vpop.permute.xlu0 %393
    %396 = vset.pattern.permute.xlu0 2
    %397 = vperm.xlu0 %396, %v35
    %v398 = vpop.permute.xlu0 %397
    %400 = vset.pattern.permute.xlu0 2
    %401 = vperm.xlu0 %400, %v36
    %v402 = vpop.permute.xlu0 %401
    %404 = vset.pattern.permute.xlu0 2
    %405 = vperm.xlu0 %404, %v37
    %v406 = vpop.permute.xlu0 %405
    %v408 = vperm.slane %v21, 2
    %v409 = vmul.f32 %v346, %v408
    %v410 = vmul.f32 %v350, %v408
    %v411 = vmul.f32 %v354, %v408
    %v412 = vmul.f32 %v358, %v408
    %v413 = vmul.f32 %v362, %v408
    %v414 = vmul.f32 %v366, %v408
    %v415 = vmul.f32 %v370, %v408
    %v416 = vmul.f32 %v374, %v408
    %v417 = vmul.f32 %v378, %v408
    %v418 = vmul.f32 %v382, %v408
    %v419 = vmul.f32 %v386, %v408
    %v420 = vmul.f32 %v390, %v408
    %v421 = vmul.f32 %v394, %v408
    %v422 = vmul.f32 %v398, %v408
    %v423 = vmul.f32 %v402, %v408
    %v424 = vmul.f32 %v406, %v408
    %v425 = vadd.f32 %v328, %v409
    %v426 = vadd.f32 %v329, %v410
    %v427 = vadd.f32 %v330, %v411
    %v428 = vadd.f32 %v331, %v412
    %v429 = vadd.f32 %v332, %v413
    %v430 = vadd.f32 %v333, %v414
    %v431 = vadd.f32 %v334, %v415
    %v432 = vadd.f32 %v335, %v416
    %v433 = vadd.f32 %v336, %v417
    %v434 = vadd.f32 %v337, %v418
    %v435 = vadd.f32 %v338, %v419
    %v436 = vadd.f32 %v339, %v420
    %v437 = vadd.f32 %v340, %v421
    %v438 = vadd.f32 %v341, %v422
    %v439 = vadd.f32 %v342, %v423
    %v440 = vadd.f32 %v343, %v424
    %441 = vset.pattern.permute.xlu0 3
    %442 = vperm.xlu0 %441, %v22
    %v443 = vpop.permute.xlu0 %442
    %445 = vset.pattern.permute.xlu0 3
    %446 = vperm.xlu0 %445, %v23
    %v447 = vpop.permute.xlu0 %446
    %449 = vset.pattern.permute.xlu0 3
    %450 = vperm.xlu0 %449, %v24
    %v451 = vpop.permute.xlu0 %450
    %453 = vset.pattern.permute.xlu0 3
    %454 = vperm.xlu0 %453, %v25
    %v455 = vpop.permute.xlu0 %454
    %457 = vset.pattern.permute.xlu0 3
    %458 = vperm.xlu0 %457, %v26
    %v459 = vpop.permute.xlu0 %458
    %461 = vset.pattern.permute.xlu0 3
    %462 = vperm.xlu0 %461, %v27
    %v463 = vpop.permute.xlu0 %462
    %465 = vset.pattern.permute.xlu0 3
    %466 = vperm.xlu0 %465, %v28
    %v467 = vpop.permute.xlu0 %466
    %469 = vset.pattern.permute.xlu0 3
    %470 = vperm.xlu0 %469, %v29
    %v471 = vpop.permute.xlu0 %470
    %473 = vset.pattern.permute.xlu0 3
    %474 = vperm.xlu0 %473, %v30
    %v475 = vpop.permute.xlu0 %474
    %477 = vset.pattern.permute.xlu0 3
    %478 = vperm.xlu0 %477, %v31
    %v479 = vpop.permute.xlu0 %478
    %481 = vset.pattern.permute.xlu0 3
    %482 = vperm.xlu0 %481, %v32
    %v483 = vpop.permute.xlu0 %482
    %485 = vset.pattern.permute.xlu0 3
    %486 = vperm.xlu0 %485, %v33
    %v487 = vpop.permute.xlu0 %486
    %489 = vset.pattern.permute.xlu0 3
    %490 = vperm.xlu0 %489, %v34
    %v491 = vpop.permute.xlu0 %490
    %493 = vset.pattern.permute.xlu0 3
    %494 = vperm.xlu0 %493, %v35
    %v495 = vpop.permute.xlu0 %494
    %497 = vset.pattern.permute.xlu0 3
    %498 = vperm.xlu0 %497, %v36
    %v499 = vpop.permute.xlu0 %498
    %501 = vset.pattern.permute.xlu0 3
    %502 = vperm.xlu0 %501, %v37
    %v503 = vpop.permute.xlu0 %502
    %v505 = vperm.slane %v21, 3
    %v506 = vmul.f32 %v443, %v505
    %v507 = vmul.f32 %v447, %v505
    %v508 = vmul.f32 %v451, %v505
    %v509 = vmul.f32 %v455, %v505
    %v510 = vmul.f32 %v459, %v505
    %v511 = vmul.f32 %v463, %v505
    %v512 = vmul.f32 %v467, %v505
    %v513 = vmul.f32 %v471, %v505
    %v514 = vmul.f32 %v475, %v505
    %v515 = vmul.f32 %v479, %v505
    %v516 = vmul.f32 %v483, %v505
    %v517 = vmul.f32 %v487, %v505
    %v518 = vmul.f32 %v491, %v505
    %v519 = vmul.f32 %v495, %v505
    %v520 = vmul.f32 %v499, %v505
    %v521 = vmul.f32 %v503, %v505
    %v522 = vadd.f32 %v425, %v506
    %v523 = vadd.f32 %v426, %v507
    %v524 = vadd.f32 %v427, %v508
    %v525 = vadd.f32 %v428, %v509
    %v526 = vadd.f32 %v429, %v510
    %v527 = vadd.f32 %v430, %v511
    %v528 = vadd.f32 %v431, %v512
    %v529 = vadd.f32 %v432, %v513
    %v530 = vadd.f32 %v433, %v514
    %v531 = vadd.f32 %v434, %v515
    %v532 = vadd.f32 %v435, %v516
    %v533 = vadd.f32 %v436, %v517
    %v534 = vadd.f32 %v437, %v518
    %v535 = vadd.f32 %v438, %v519
    %v536 = vadd.f32 %v439, %v520
    %v537 = vadd.f32 %v440, %v521
    %v538 = vmax.f32 %v522, 0.0
    %v539 = vmax.f32 %v523, 0.0
    %v540 = vmax.f32 %v524, 0.0
    %v541 = vmax.f32 %v525, 0.0
    %v542 = vmax.f32 %v526, 0.0
    %v543 = vmax.f32 %v527, 0.0
    %v544 = vmax.f32 %v528, 0.0
    %v545 = vmax.f32 %v529, 0.0
    %v546 = vmax.f32 %v530, 0.0
    %v547 = vmax.f32 %v531, 0.0
    %v548 = vmax.f32 %v532, 0.0
    %v549 = vmax.f32 %v533, 0.0
    %v550 = vmax.f32 %v534, 0.0
    %v551 = vmax.f32 %v535, 0.0
    %v552 = vmax.f32 %v536, 0.0
    %v553 = vmax.f32 %v537, 0.0
    %v554 = vld [vmem:[%s3] sm:$0x3]
    %v555 = vld [vmem:[%s4] sm:$0x3]
    %557 = vset.pattern.permute.xlu0 0
    %558 = vperm.xlu0 %557, %v555
    %v559 = vpop.permute.xlu0 %558
    %561 = vmatpush.msra.mxu0 %v553
    %562 = vmatpush.msra.mxu0 %v552
    %563 = vmatpush.msra.mxu0 %v551
    %564 = vmatpush.msra.mxu0 %v550
    %565 = vmatpush.msra.mxu0 %v549
    %566 = vmatpush.msra.mxu0 %v548
    %567 = vmatpush.msra.mxu0 %v547
    %568 = vmatpush.msra.mxu0 %v546
    %569 = vmatpush.msra.mxu0 %v545
    %570 = vmatpush.msra.mxu0 %v544
    %571 = vmatpush.msra.mxu0 %v543
    %572 = vmatpush.msra.mxu0 %v542
    %573 = vmatpush.msra.mxu0 %v541
    %574 = vmatpush.msra.mxu0 %v540
    %575 = vmatpush.msra.mxu0 %v539
    %576 = vmatpush.msra.mxu0 %v538
    %577 = vmatmul.f32.gmra.mxu0 %v554
    %v578 = vpop.f32.mrf.mxu0
    %v579 = vadd.f32 %v559, %v578
    %580 = vdwg.mxu0
    %v582 = vrot.slane %v579, 7
    %v584 = vsub.f32 %v579, %v582
    %v585 = vsub.f32 0.0, %v584
    %v586 = vmul.f32 %v585, 1.442695
    %v587 = vpow.pop %v586
    %v588 = vadd.f32 %v587, 1.0
    %v589 = vrcp.pop %v588
    %v590 = vmul.f32 %v588, %v589
    %v591 = vsub.f32 1.0, %v590
    %v592 = vmul.f32 %v589, %v591
    %v593 = vadd.f32 %v589, %v592
    %vm594 = vweird.f32 %v588
    %vm595 = vweird.f32 %v589
    %vm596 = vmor %vm594, %vm595
    %v597 = vsel %vm596, %v589, %v593
    %v598 = vand.u32 2147483647, %v588
    %vm599 = vcmp.eq.f32.partialorder %v598, 8.507059e+37
    %v600 = vand.u32 %v588, 2147483648
    %v601 = vor.u32 1.1754944e-38, %v600
    %v602 = vsel %vm599, %v601, %v597
    %v603 = vmul.f32 1.0, %v602
    %v604 = vsub.f32 1.0, %v603
    %605 = vst [vmem:[#allocation2 - $0x1] sm:$0x2] %v604
    %606 = vst [vmem:[#allocation2] sm:$0x2] %v603
    // Predicated region
    $region22: #{tpu_custom_call.1} parent=1 // pred_check
      _
    $region23: #{tpu_custom_call.1} parent=1 // pred_check_branch
      %608 = sbr.rel (0) target = $region25
    $region24: #{tpu_custom_call.1} parent=1 // pred_region
      %610 = vsyncadd [#allocation3], 0
      %s612 = sshll.u32 [#allocation2], 4
      %s613 = int_to_ptr.vmem [resolvable:$true] %s612
      %s614 = sshll.u32 %s5, 4
      %s615 = int_to_ptr.hbm [resolvable:$true] %s614
      %617 = dma.vmem_to_hbm [thread:$0]  %s613, 32, %s615, [#allocation3]
    $region25: #{tpu_custom_call.1} parent=1 // pred_fallthru
      _
    // Predicated region
    $region26: #{tpu_custom_call.1} parent=1 // pred_check
      _
    $region27: #{tpu_custom_call.1} parent=1 // pred_check_branch
      %619 = sbr.rel (0) target = $region29
    $region28: #{tpu_custom_call.1} parent=1 // pred_region
      %621 = dma.done [#allocation3], 32
    $region29: #{tpu_custom_call.1} parent=1 // pred_fallthru
      _
    %622 = vsyncpa [#allocation3], 1

</llo_original>
